<compile_context>
chip_gen: v6e
topology: v6e:2x2x1
jax: 0.10.0
libtpu: 0.0.40
codegen_flags: <defaults>
</compile_context>

<pallas_src>
import functools

import jax
import jax.numpy as jnp
from jax import lax
from jax.experimental import pallas as pl
from jax.experimental.pallas import tpu as pltpu


# ---------------------------------------------------------------------------
# In-kernel helpers (shared by the single-step and m-tiled kernels).
# ---------------------------------------------------------------------------

def _project(x, w_ref, b_ref, lo, hi, operand_dtype):
    """(hi-lo, N_pad) f32 projection: W[lo:hi] @ x + b[lo:hi] (bias add in f32)."""
    w = w_ref[lo:hi, :].astype(operand_dtype)
    y = jnp.dot(w, x, preferred_element_type=jnp.float32)
    return y + b_ref[lo:hi, :]


def _attend(q, k_blk, v_blk, nmask, mvalid, operand_dtype, approx):
    """Contribution of one key/value block.

    q:      (dk, Nq)  operand_dtype  queries (all output positions)
    k_blk:  (dk, M)   operand_dtype  keys of this m-block
    v_blk:  (dv, M)                  values of this m-block
    nmask:  (1, Nq) f32 additive mask over padded n columns, or None
    mvalid: (1, M)  f32 {1,0} validity of the m positions, or None
    returns (dv, Nq) f32 partial output (sums exactly over m-blocks).
    """
    # scores[m, n] = sum_d k[d, m] * q[d, n]   ('bhkn,bhkm->bhmn', b/h squeezed).
    # Native A^T.B contraction on the MXU -- no materialized transpose.
    ctx = lax.dot_general(k_blk, q, (((0,), (0,)), ((), ())),
                          preferred_element_type=jnp.float32)            # (M, Nq)
    if nmask is not None:
        ctx = ctx + nmask                                                # mask padded n
    # Stable softmax over n (axis=-1, exactly as the PyTorch module); the
    # normalization is deferred off the big (M, Nq) tile.
    ctx = ctx - jnp.max(ctx, axis=-1, keepdims=True)
    p = jnp.exp(ctx).astype(operand_dtype)                               # (M, Nq)

    # Row sums in *lane* orientation via an MXU matvec -> (1, M); the divide then
    # lands on the small (dv, M) value tile, not the (M, Nq) probability tile.
    ones_row = jnp.ones((1, q.shape[1]), dtype=operand_dtype)
    s = lax.dot_general(ones_row, p, (((1,), (1,)), ((), ())),
                        preferred_element_type=jnp.float32)              # (1, M)
    inv_s = pl.reciprocal(s, approx=True) if approx else (1.0 / s)
    if mvalid is not None:
        inv_s = inv_s * mvalid                                           # drop padded m
    v_scaled = (v_blk.astype(jnp.float32) * inv_s).astype(operand_dtype)

    # out[v, n] += sum_m v_scaled[v, m] * p[m, n]   ('bhmn,bhvm->bhvn')
    return jnp.dot(v_scaled, p, preferred_element_type=jnp.float32)      # (dv, Nq)


# ---------------------------------------------------------------------------
# Kernels.
# ---------------------------------------------------------------------------

def _attention_kernel_full(dk, dv, padded, operand_dtype, approx,
                           x_ref, w_ref, b_ref, nmask_ref, mvalid_ref, o_ref):
    """grid=(B,): whole attention for one batch element in a single grid step."""
    x = x_ref[0]                                                         # (C, N_pad)
    q = _project(x, w_ref, b_ref, 0, dk, operand_dtype).astype(operand_dtype)
    k = _project(x, w_ref, b_ref, dk, 2 * dk, operand_dtype).astype(operand_dtype)
    v = _project(x, w_ref, b_ref, 2 * dk, 2 * dk + dv, operand_dtype)    # stays f32
    nmask = nmask_ref[...] if padded else None
    mvalid = mvalid_ref[...] if padded else None
    out = _attend(q, k, v, nmask, mvalid, operand_dtype, approx)
    o_ref[0] = out.astype(o_ref.dtype)


def _attention_kernel_tiled(dk, dv, m_blk, padded, operand_dtype, approx,
                            x_ref, w_ref, b_ref, nmask_ref, mvalid_ref, o_ref,
                            q_sc, k_sc, v_sc, acc_sc):
    """grid=(B, num_m): key (m) axis tiled; q/k/v projected once per batch."""
    j = pl.program_id(1)                       # m-block index (reduction axis)

    @pl.when(j == 0)
    def _():
        x = x_ref[0]                                                     # (C, N_pad)
        q_sc[...] = _project(x, w_ref, b_ref, 0, dk,
                             operand_dtype).astype(operand_dtype)
        k_sc[...] = _project(x, w_ref, b_ref, dk, 2 * dk,
                             operand_dtype).astype(operand_dtype)
        v_sc[...] = _project(x, w_ref, b_ref, 2 * dk, 2 * dk + dv,
                             operand_dtype).astype(operand_dtype)
        acc_sc[...] = jnp.zeros_like(acc_sc)

    off = pl.multiple_of(j * m_blk, m_blk)
    k_blk = k_sc[:, pl.ds(off, m_blk)]                                   # (dk, m_blk)
    v_blk = v_sc[:, pl.ds(off, m_blk)]                                   # (dv, m_blk)
    nmask = nmask_ref[...] if padded else None                           # (1, N_pad)
    mvalid = mvalid_ref[...] if padded else None                         # (1, m_blk)

    acc_sc[...] += _attend(q_sc[...], k_blk, v_blk, nmask, mvalid,
                           operand_dtype, approx)

    @pl.when(j == pl.num_programs(1) - 1)
    def _():
        o_ref[0] = acc_sc[...].astype(o_ref.dtype)


# ---------------------------------------------------------------------------
# Wrapper.
# ---------------------------------------------------------------------------

def _default_vmem_limit_bytes():
    """Per-generation scoped-VMEM budget: ~102 MiB on 128-MiB parts (v5e/v6e),
    ~51 MiB on 64-MiB parts (v7x); conservative fallback if the query fails."""
    phys = 64 * 1024 * 1024
    try:
        phys = int(pltpu.get_tpu_info().vmem_capacity_bytes)
    except Exception:
        pass
    return max(min(int(phys * 0.8), phys - 12 * 1024 * 1024), 32 * 1024 * 1024)


def self_attention_pallas(x_nchw, wq, bq, wk, bk, wv, bv, scale, *,
                          m_blk=None, operand_dtype=jnp.bfloat16,
                          vmem_limit_bytes=None):
    """SelfAttention forward (standard path).

    x_nchw: (B, C, H, W).  w*: (d_out, C) folded conv1x1(+BN eval) weights,
    b*: (d_out, 1) folded biases.  operand_dtype sets the MXU operand dtype
    (bf16 recommended on v5e/v6e/v7x; elementwise/softmax math is always f32);
    pass jnp.float32 for a tight-tolerance exact path.
    """
    B, C, H, W = x_nchw.shape
    N = H * W
    dk = int(wq.shape[0])
    dv = int(wv.shape[0])
    out_dtype = x_nchw.dtype
    op_bytes = jnp.dtype(operand_dtype).itemsize
    out_bytes = jnp.dtype(out_dtype).itemsize
    approx = jnp.dtype(operand_dtype) != jnp.dtype(jnp.float32)

    # Lane-dense layout: pad the flattened spatial axis to a multiple of 128.
    N_pad = int(pl.cdiv(N, 128) * 128)
    padded = N_pad != N
    x = x_nchw.reshape(B, C, N).astype(operand_dtype)
    if padded:
        x = jnp.pad(x, ((0, 0), (0, 0), (0, N_pad - N)))

    # Precomputed masks (only read in-kernel when `padded`):
    #   nmask:  additive 0 / -1e30 over padded query (n) columns
    #   mvalid: multiplicative 1 / 0 validity of key (m) positions
    n_idx = jnp.arange(N_pad)
    nmask = jnp.where(n_idx < N, 0.0, -1e30).astype(jnp.float32)[None, :]
    mvalid = (n_idx < N).astype(jnp.float32)[None, :]

    # Fold the q/k scale into the fused projection weights/biases.
    w_all = jnp.concatenate([wq * scale, wk * scale, wv], axis=0).astype(jnp.float32)
    b_all = jnp.concatenate([bq * scale, bk * scale, bv], axis=0).astype(jnp.float32)
    d_all = 2 * dk + dv

    if vmem_limit_bytes is None:
        vmem_limit_bytes = _default_vmem_limit_bytes()

    # Choose between the single-step path (m axis collapsed) and the m-tiled path.
    if m_blk is None:
        if N_pad <= 1024:
            use_small = True
        else:
            # Resident VMEM: double-buffered x/out blocks, q/k/v/acc scratches, masks.
            resident = (2 * C * N_pad * op_bytes
                        + 2 * dv * N_pad * out_bytes
                        + (2 * dk + dv) * N_pad * op_bytes
                        + dv * N_pad * 4
                        + 8 * N_pad * 4
                        + 2 * d_all * (C + 1) * 4)
            per_row = N_pad * (4 + op_bytes)      # ctx (f32) + p (operand) per m row
            budget = max(vmem_limit_bytes - resident - (4 << 20), 128 * per_row)
            cand = max(min(budget // per_row, 1024, N_pad), 128)
            cand = max((cand // 128) * 128, 128)
            while N_pad % cand != 0:
                cand -= 128
            m_blk = int(cand)
            use_small = m_blk >= N_pad
    else:
        assert m_blk % 128 == 0 and N_pad % m_blk == 0
        use_small = m_blk >= N_pad

    if use_small:
        kernel = functools.partial(_attention_kernel_full, dk, dv, padded,
                                   operand_dtype, approx)
        grid_spec = pltpu.PrefetchScalarGridSpec(
            num_scalar_prefetch=0,
            grid=(B,),
            in_specs=[
                pl.BlockSpec((1, C, N_pad), lambda b: (b, 0, 0)),        # x
                pl.BlockSpec((d_all, C), lambda b: (0, 0)),              # fused weights
                pl.BlockSpec((d_all, 1), lambda b: (0, 0)),              # fused biases
                pl.BlockSpec((1, N_pad), lambda b: (0, 0)),              # additive n mask
                pl.BlockSpec((1, N_pad), lambda b: (0, 0)),              # m validity
            ],
            out_specs=pl.BlockSpec((1, dv, N_pad), lambda b: (b, 0, 0)),
        )
        dim_sem = ("parallel",)
    else:
        num_m = N_pad // m_blk
        kernel = functools.partial(_attention_kernel_tiled, dk, dv, m_blk, padded,
                                   operand_dtype, approx)
        # Note: with the m axis 'arbitrary', a B == 1 workload uses a single
        # TensorCore on v7x; a 2-way partial-accumulator core split would recover
        # that.  The batch axis already shards across cores when B >= 2.
        grid_spec = pltpu.PrefetchScalarGridSpec(
            num_scalar_prefetch=0,
            grid=(B, num_m),
            in_specs=[
                pl.BlockSpec((1, C, N_pad), lambda b, j: (b, 0, 0)),     # x (per batch)
                pl.BlockSpec((d_all, C), lambda b, j: (0, 0)),           # fused weights
                pl.BlockSpec((d_all, 1), lambda b, j: (0, 0)),           # fused biases
                pl.BlockSpec((1, N_pad), lambda b, j: (0, 0)),           # additive n mask
                pl.BlockSpec((1, m_blk), lambda b, j: (0, j)),           # m validity block
            ],
            out_specs=pl.BlockSpec((1, dv, N_pad), lambda b, j: (b, 0, 0)),
            scratch_shapes=[
                pltpu.VMEM((dk, N_pad), operand_dtype),    # q (cached per batch)
                pltpu.VMEM((dk, N_pad), operand_dtype),    # k
                pltpu.VMEM((dv, N_pad), operand_dtype),    # v
                pltpu.VMEM((dv, N_pad), jnp.float32),      # output accumulator
            ],
        )
        dim_sem = ("parallel", "arbitrary")

    out = pl.pallas_call(
        kernel,
        out_shape=jax.ShapeDtypeStruct((B, dv, N_pad), out_dtype),
        grid_spec=grid_spec,
        compiler_params=pltpu.CompilerParams(
            dimension_semantics=dim_sem,
            vmem_limit_bytes=int(vmem_limit_bytes),
        ),
    )(x, w_all, b_all, nmask, mvalid)

    return out[:, :, :N].reshape(B, dv, H, W)


# ---------------------------------------------------------------------------
# Pure-JAX reference + test scaffolding.
# ---------------------------------------------------------------------------

def _fold_conv_bn(w_conv, gamma, beta, running_mean, running_var, eps=1e-5):
    """Fold conv1x1 (no bias) followed by eval-mode BatchNorm2d into (W_eff, b_eff)."""
    inv_std = gamma / jnp.sqrt(running_var + eps)
    w_eff = w_conv * inv_std[:, None]
    b_eff = beta - running_mean * inv_std
    return w_eff, b_eff[:, None]


def reference_jax(x_nchw, wq, bq, wk, bk, wv, bv, scale):
    """Pure-JAX reference matching the PyTorch module (biases are (d, 1))."""
    B, C, H, W = x_nchw.shape
    x = x_nchw.reshape(B, C, H * W)
    q = (jnp.einsum('dc,bcn->bdn', wq, x) + bq[None]) * scale
    k = (jnp.einsum('dc,bcn->bdn', wk, x) + bk[None]) * scale
    v = jnp.einsum('dc,bcn->bdn', wv, x) + bv[None]
    q = q[:, None]; k = k[:, None]; v = v[:, None]      # num_heads = 1
    ctx = jnp.einsum('bhkn,bhkm->bhmn', q, k)
    ctx = jax.nn.softmax(ctx, axis=-1)
    out = jnp.einsum('bhmn,bhvm->bhvn', ctx, v)
    return out.reshape(B, -1, H, W)


def _make_case(key, B, C_in, C_out, dim_key, H, W, value_bias):
    ks = jax.random.split(key, 9)
    x = jax.random.normal(ks[0], (B, C_in, H, W), dtype=jnp.float32)
    wq_conv = jax.random.normal(ks[1], (dim_key, C_in), dtype=jnp.float32) * 0.1
    wk_conv = jax.random.normal(ks[2], (dim_key, C_in), dtype=jnp.float32) * 0.1
    wv_conv = jax.random.normal(ks[3], (C_out, C_in), dtype=jnp.float32) * 0.1
    gq = 1.0 + 0.1 * jax.random.normal(ks[4], (dim_key,), dtype=jnp.float32)
    bq_bn = 0.1 * jax.random.normal(ks[5], (dim_key,), dtype=jnp.float32)
    gk = 1.0 + 0.1 * jax.random.normal(ks[6], (dim_key,), dtype=jnp.float32)
    bk_bn = 0.1 * jax.random.normal(ks[7], (dim_key,), dtype=jnp.float32)
    run_mean = jnp.zeros((dim_key,), jnp.float32)
    run_var = jnp.ones((dim_key,), jnp.float32)
    # TODO(synk): BatchNorm2d is modeled in eval mode (running stats only);
    # training-mode batch statistics are not modeled here.
    wq, bq = _fold_conv_bn(wq_conv, gq, bq_bn, run_mean, run_var)
    wk, bk = _fold_conv_bn(wk_conv, gk, bk_bn, run_mean, run_var)
    if value_bias:
        bv = 0.1 * jax.random.normal(ks[8], (C_out, 1), dtype=jnp.float32)
    else:
        bv = jnp.zeros((C_out, 1), jnp.float32)
    scale = dim_key ** (-0.25)
    return x, wq, bq, wk, bk, wv_conv, bv, scale


if __name__ == "__main__":
    B, C_in, C_out, dim_key = 2, 4, 8, 16
    keys = jax.random.split(jax.random.PRNGKey(0), 4)

    def rel_err(a, b):
        return float(jnp.max(jnp.abs(a - b)) / (jnp.max(jnp.abs(b)) + 1e-12))

    # Case 1: N = 16*16 = 256 (no padding).  Auto path -> single grid step per
    # batch, bf16 MXU operands (recommended default on every TPU generation).
    x1, wq1, bq1, wk1, bk1, wv1, bv1, s1 = _make_case(
        keys[0], B, C_in, C_out, dim_key, 16, 16, value_bias=False)
    out1 = jax.block_until_ready(
        self_attention_pallas(x1, wq1, bq1, wk1, bk1, wv1, bv1, s1))
    ref1 = reference_jax(x1, wq1, bq1, wk1, bk1, wv1, bv1, s1)
    assert out1.shape == (B, C_out, 16, 16)
    assert rel_err(out1, ref1) < 5e-2, f"case1 bf16 error {rel_err(out1, ref1)}"

    # Case 2: N = 12*12 = 144 -> padded to 256.  Single-step path with n/m
    # masking, f32 operands + exact reciprocal, value conv with a bias.
    x2, wq2, bq2, wk2, bk2, wv2, bv2, s2 = _make_case(
        keys[1], B, C_in, C_out, dim_key, 12, 12, value_bias=True)
    out2 = jax.block_until_ready(
        self_attention_pallas(x2, wq2, bq2, wk2, bk2, wv2, bv2, s2,
                              operand_dtype=jnp.float32))
    ref2 = reference_jax(x2, wq2, bq2, wk2, bk2, wv2, bv2, s2)
    assert out2.shape == (B, C_out, 12, 12)
    assert jnp.allclose(out2, ref2, atol=2e-3, rtol=2e-3), \
        f"case2 f32 mismatch {float(jnp.max(jnp.abs(out2 - ref2)))}"

    # Case 3: N = 20*20 = 400 -> padded to 512, explicit m_blk=128 -> tiled path
    # with 4 m-blocks (including a partially-valid last block), f32 exact.
    x3, wq3, bq3, wk3, bk3, wv3, bv3, s3 = _make_case(
        keys[2], B, C_in, C_out, dim_key, 20, 20, value_bias=True)
    out3 = jax.block_until_ready(
        self_attention_pallas(x3, wq3, bq3, wk3, bk3, wv3, bv3, s3,
                              m_blk=128, operand_dtype=jnp.float32))
    ref3 = reference_jax(x3, wq3, bq3, wk3, bk3, wv3, bv3, s3)
    assert out3.shape == (B, C_out, 20, 20)
    assert jnp.allclose(out3, ref3, atol=2e-3, rtol=2e-3), \
        f"case3 f32 tiled mismatch {float(jnp.max(jnp.abs(out3 - ref3)))}"

    # Case 4: N = 256 unpadded, explicit m_blk=128 -> tiled path, bf16 operands.
    x4, wq4, bq4, wk4, bk4, wv4, bv4, s4 = _make_case(
        keys[3], B, C_in, C_out, dim_key, 16, 16, value_bias=True)
    out4 = jax.block_until_ready(
        self_attention_pallas(x4, wq4, bq4, wk4, bk4, wv4, bv4, s4, m_blk=128))
    ref4 = reference_jax(x4, wq4, bq4, wk4, bk4, wv4, bv4, s4)
    assert out4.shape == (B, C_out, 16, 16)
    assert rel_err(out4, ref4) < 5e-2, f"case4 bf16 tiled error {rel_err(out4, ref4)}"

    print("KERNEL_OK")
</pallas_src>

<mosaic_0001>
module attributes {stable_mosaic.version = 11 : i64} {
  func.func @_attention_kernel_full(%arg0: i32, %arg1: memref<1x4x256xbf16, #tpu.memory_space<vmem>>, %arg2: memref<40x4xf32, #tpu.memory_space<vmem>>, %arg3: memref<40x1xf32, #tpu.memory_space<vmem>>, %arg4: memref<1x256xf32, #tpu.memory_space<vmem>>, %arg5: memref<1x256xf32, #tpu.memory_space<vmem>>, %arg6: memref<1x8x256xf32, #tpu.memory_space<vmem>>) attributes {dimension_semantics = [#tpu.dimension_semantics<parallel>], iteration_bounds = array<i64: 2>, scalar_prefetch = 0 : i64, scratch_operands = 0 : i64, tpu.core_type = #tpu.core_type<tc>, window_params = [{transform_indices = @transform_0, window_bounds = array<i64: 1, 4, 256>}, {pipeline_mode = #tpu.pipeline_mode<synchronous>, transform_indices = @transform_1, window_bounds = array<i64: 40, 4>}, {pipeline_mode = #tpu.pipeline_mode<synchronous>, transform_indices = @transform_2, window_bounds = array<i64: 40, 1>}, {pipeline_mode = #tpu.pipeline_mode<synchronous>, transform_indices = @transform_3, window_bounds = array<i64: 1, 256>}, {pipeline_mode = #tpu.pipeline_mode<synchronous>, transform_indices = @transform_4, window_bounds = array<i64: 1, 256>}, {transform_indices = @transform_5, window_bounds = array<i64: 1, 8, 256>}]} {
    %c0 = arith.constant 0 : index
    %c0_0 = arith.constant 0 : index
    %c0_1 = arith.constant 0 : index
    %0 = vector.load %arg1[%c0, %c0_0, %c0_1] : memref<1x4x256xbf16, #tpu.memory_space<vmem>>, vector<1x4x256xbf16>
    %1 = vector.shape_cast %0 : vector<1x4x256xbf16> to vector<4x256xbf16>
    %c0_2 = arith.constant 0 : index
    %c0_3 = arith.constant 0 : index
    %2 = vector.load %arg2[%c0_2, %c0_3] : memref<40x4xf32, #tpu.memory_space<vmem>>, vector<16x4xf32>
    %3 = arith.truncf %2 : vector<16x4xf32> to vector<16x4xbf16>
    %cst = arith.constant dense<0.000000e+00> : vector<16x256xf32>
    %4 = tpu.matmul %3, %1, %cst {dimension_numbers = #tpu.dot_dimension_numbers<[1], [0], [0], [1], [0, 0, 1, 1], [], []>} : vector<16x4xbf16>, vector<4x256xbf16>, vector<16x256xf32> -> vector<16x256xf32>
    %c0_4 = arith.constant 0 : index
    %c0_5 = arith.constant 0 : index
    %5 = vector.load %arg3[%c0_4, %c0_5] : memref<40x1xf32, #tpu.memory_space<vmem>>, vector<16x1xf32>
    %6 = vector.broadcast %5 : vector<16x1xf32> to vector<16x256xf32>
    %7 = arith.addf %4, %6 : vector<16x256xf32>
    %8 = arith.truncf %7 : vector<16x256xf32> to vector<16x256xbf16>
    %c16 = arith.constant 16 : index
    %c0_6 = arith.constant 0 : index
    %9 = vector.load %arg2[%c16, %c0_6] : memref<40x4xf32, #tpu.memory_space<vmem>>, vector<16x4xf32>
    %10 = arith.truncf %9 : vector<16x4xf32> to vector<16x4xbf16>
    %cst_7 = arith.constant dense<0.000000e+00> : vector<16x256xf32>
    %11 = tpu.matmul %10, %1, %cst_7 {dimension_numbers = #tpu.dot_dimension_numbers<[1], [0], [0], [1], [0, 0, 1, 1], [], []>} : vector<16x4xbf16>, vector<4x256xbf16>, vector<16x256xf32> -> vector<16x256xf32>
    %c16_8 = arith.constant 16 : index
    %c0_9 = arith.constant 0 : index
    %12 = vector.load %arg3[%c16_8, %c0_9] : memref<40x1xf32, #tpu.memory_space<vmem>>, vector<16x1xf32>
    %13 = vector.broadcast %12 : vector<16x1xf32> to vector<16x256xf32>
    %14 = arith.addf %11, %13 : vector<16x256xf32>
    %15 = arith.truncf %14 : vector<16x256xf32> to vector<16x256xbf16>
    %c32 = arith.constant 32 : index
    %c0_10 = arith.constant 0 : index
    %16 = vector.load %arg2[%c32, %c0_10] : memref<40x4xf32, #tpu.memory_space<vmem>>, vector<8x4xf32>
    %17 = arith.truncf %16 : vector<8x4xf32> to vector<8x4xbf16>
    %cst_11 = arith.constant dense<0.000000e+00> : vector<8x256xf32>
    %18 = tpu.matmul %17, %1, %cst_11 {dimension_numbers = #tpu.dot_dimension_numbers<[1], [0], [0], [1], [0, 0, 1, 1], [], []>} : vector<8x4xbf16>, vector<4x256xbf16>, vector<8x256xf32> -> vector<8x256xf32>
    %c32_12 = arith.constant 32 : index
    %c0_13 = arith.constant 0 : index
    %19 = vector.load %arg3[%c32_12, %c0_13] : memref<40x1xf32, #tpu.memory_space<vmem>>, vector<8x1xf32>
    %20 = vector.broadcast %19 : vector<8x1xf32> to vector<8x256xf32>
    %21 = arith.addf %18, %20 : vector<8x256xf32>
    %cst_14 = arith.constant dense<0.000000e+00> : vector<256x256xf32>
    %22 = tpu.matmul %15, %8, %cst_14 {dimension_numbers = #tpu.dot_dimension_numbers<[0], [0], [1], [1], [0, 1, 1, 1], [], []>} : vector<16x256xbf16>, vector<16x256xbf16>, vector<256x256xf32> -> vector<256x256xf32>
    %cst_15 = arith.constant dense<0xFF800000> : vector<256xf32>
    %23 = vector.multi_reduction <maximumf>, %22, %cst_15 [1] : vector<256x256xf32> to vector<256xf32>
    %24 = vector.shape_cast %23 : vector<256xf32> to vector<256x1xf32>
    %25 = vector.broadcast %24 : vector<256x1xf32> to vector<256x256xf32>
    %26 = arith.subf %22, %25 : vector<256x256xf32>
    %27 = math.exp %26 : vector<256x256xf32>
    %28 = arith.truncf %27 : vector<256x256xf32> to vector<256x256xbf16>
    %cst_16 = arith.constant 1.000000e+00 : bf16
    %29 = vector.broadcast %cst_16 : bf16 to vector<1x256xbf16>
    %cst_17 = arith.constant dense<0.000000e+00> : vector<1x256xf32>
    %30 = tpu.matmul %29, %28, %cst_17 {dimension_numbers = #tpu.dot_dimension_numbers<[1], [1], [0], [0], [0, 0, 1, 0], [], []>} : vector<1x256xbf16>, vector<256x256xbf16>, vector<1x256xf32> -> vector<1x256xf32>
    %31 = tpu.reciprocal %30 {approx = true} : vector<1x256xf32> -> vector<1x256xf32>
    %32 = vector.broadcast %31 : vector<1x256xf32> to vector<8x256xf32>
    %33 = arith.mulf %21, %32 : vector<8x256xf32>
    %34 = arith.truncf %33 : vector<8x256xf32> to vector<8x256xbf16>
    %cst_18 = arith.constant dense<0.000000e+00> : vector<8x256xf32>
    %35 = tpu.matmul %34, %28, %cst_18 {dimension_numbers = #tpu.dot_dimension_numbers<[1], [0], [0], [1], [0, 0, 1, 1], [], []>} : vector<8x256xbf16>, vector<256x256xbf16>, vector<8x256xf32> -> vector<8x256xf32>
    %c0_19 = arith.constant 0 : index
    %c0_20 = arith.constant 0 : index
    %c0_21 = arith.constant 0 : index
    %36 = vector.load %arg6[%c0_19, %c0_20, %c0_21] : memref<1x8x256xf32, #tpu.memory_space<vmem>>, vector<1x8x256xf32>
    %37 = vector.shape_cast %36 : vector<1x8x256xf32> to vector<8x256xf32>
    %38 = vector.shape_cast %35 : vector<8x256xf32> to vector<1x8x256xf32>
    tpu.vector_store %arg6[%c0_19, %c0_20, %c0_21], %38 {strides = array<i32>} : memref<1x8x256xf32, #tpu.memory_space<vmem>>, vector<1x8x256xf32>,
    return
  }
  func.func @transform_0(%arg0: i32) -> (i32, i32, i32) {
    %c0_i32 = arith.constant 0 : i32
    %c0_i32_0 = arith.constant 0 : i32
    %c0_i32_1 = arith.constant 0 : i32
    return %arg0, %c0_i32, %c0_i32_0 : i32, i32, i32
  }
  func.func @transform_1(%arg0: i32) -> (i32, i32) {
    %c0_i32 = arith.constant 0 : i32
    %c0_i32_0 = arith.constant 0 : i32
    %c0_i32_1 = arith.constant 0 : i32
    return %c0_i32, %c0_i32_0 : i32, i32
  }
  func.func @transform_2(%arg0: i32) -> (i32, i32) {
    %c0_i32 = arith.constant 0 : i32
    %c0_i32_0 = arith.constant 0 : i32
    %c0_i32_1 = arith.constant 0 : i32
    return %c0_i32, %c0_i32_0 : i32, i32
  }
  func.func @transform_3(%arg0: i32) -> (i32, i32) {
    %c0_i32 = arith.constant 0 : i32
    %c0_i32_0 = arith.constant 0 : i32
    %c0_i32_1 = arith.constant 0 : i32
    return %c0_i32, %c0_i32_0 : i32, i32
  }
  func.func @transform_4(%arg0: i32) -> (i32, i32) {
    %c0_i32 = arith.constant 0 : i32
    %c0_i32_0 = arith.constant 0 : i32
    %c0_i32_1 = arith.constant 0 : i32
    return %c0_i32, %c0_i32_0 : i32, i32
  }
  func.func @transform_5(%arg0: i32) -> (i32, i32, i32) {
    %c0_i32 = arith.constant 0 : i32
    %c0_i32_0 = arith.constant 0 : i32
    %c0_i32_1 = arith.constant 0 : i32
    return %arg0, %c0_i32, %c0_i32_0 : i32, i32, i32
  }
}

</mosaic_0001>

<llo_original>
// kernel: tpu_custom_call.1
$region0: #{tpu_custom_call.1}
  #allocation0 [shape = 'u32[]', space=smem, size = 0x4, offset = 0x4, fixed_abs, tag = 'smem constant byte address 0x4 - core index']
  #allocation1 [shape = 'u32[144,128]{1,0:T(1,128)}', space=vmem, size = 0x12000, scoped, tag = 'internal scratch']
  %s0 = inlined_call_operand.vmem [shape: bf16[2,4,256], index: 0, kind: input, shape index: {}]
  %s1 = inlined_call_operand.vmem [shape: f32[40,4], index: 1, kind: input, shape index: {}]
  %s2 = inlined_call_operand.vmem [shape: f32[40,1], index: 2, kind: input, shape index: {}]
  %s3 = inlined_call_operand.vmem [shape: f32[1,256], index: 3, kind: input, shape index: {}]
  %s4 = inlined_call_operand.vmem [shape: f32[1,256], index: 4, kind: input, shape index: {}]
  %s5 = inlined_call_operand.hbm [shape: f32[2,8,256], index: 5, kind: output, shape index: {}]
  %s6 = sld [smem:[#allocation0]]
  $region53: #{tpu_custom_call.1} parent=0
    _
  %s8 = ssub.s32 1, %s6
  %s9 = scalar_select 0, %s8, %s6
  $region1: #{tpu_custom_call.1} parent=0
    #allocation2 [shape = 'u8[16384]{0}', space=vmem, size = 0x4000, scoped, tag = 'output window, operand 0']
    #allocation3 [shape = 's32[2]{0}', space=sflag, size = 0x8, scoped, tag = 'scoped memory for tpu_custom_call.1']
    %10 = vsyncpa [#allocation3], 0
    %s11 = scalar_lea.sflag [#allocation3], 1
    %12 = vsyncpa %s11, 0
    loop: start=0, step=1, limit=4
    $region2: #{tpu_custom_call.1} parent=1 // loop_pre_header
      _
    $region3: #{tpu_custom_call.1} parent=1 // loop_header
      %s14 = sphi 0, %s18
      %p15 = scmp.ge.s32.totalorder %s14, 4
      %s24 = sphi 0, %s26
      %s27 = sphi 0, %s24
      %s28 = sphi 0, %s27
      %s44 = sphi 0, %s28
      %s48 = sphi 0, %s48
      %s50 = sphi 0, %s48
      %s51 = sphi 0, %s50
      %s65 = sphi 0, %s51
      %s69 = sphi 0, %s69
      %s71 = sphi 0, %s69
      %s72 = sphi 0, %s71
      %s86 = sphi 0, %s72
      %s90 = sphi 0, %s90
      %s92 = sphi 0, %s90
      %s93 = sphi 0, %s92
      %s107 = sphi 0, %s93
      %s111 = sphi 0, %s111
      %s113 = sphi 0, %s111
      %s114 = sphi 0, %s113
      %s128 = sphi 0, %s114
      %s134 = sphi 0, %s136
      %s137 = sphi 0, %s134
      %s138 = sphi 0, %s137
      %s154 = sphi 0, %s138
    $region4: #{tpu_custom_call.1} parent=1 // loop_header_branch
      %17 = sbr.rel (%p15) target = $region8
    $region5: #{tpu_custom_call.1} parent=1 // loop_body
      %s19 = ssub.s32 %s14, 1
      %s20 = ssub.s32 %s14, 2
      %s21 = sadd.s32 %s14, 1
      %s22 = ssub.s32 %s14, %s21
      %p23 = scmp.eq.s32.totalorder %s22, 0
      %s25 = sadd.s32 %s24, 1
      %s26 = scalar_select %p23, %s24, %s25
      %p29 = pneg %p23
      %p30 = scmp.eq.s32.totalorder %s14, 1
      %p31 = por %p29, %p30
      %p32 = scmp.ne.s32.totalorder %s24, %s27
      %p33 = scmp.eq.s32.totalorder %s14, 0
      %p34 = por %p32, %p33
      %p35 = scmp.ne.s32.totalorder %s24, %s27
      %p36 = scmp.eq.s32.totalorder %s19, 1
      %p37 = por %p35, %p36
      %p38 = scmp.ne.s32.totalorder %s27, %s28
      %p39 = scmp.eq.s32.totalorder %s19, 0
      %p40 = por %p38, %p39
      %p41 = scmp.ne.s32.totalorder %s27, %s28
      %p42 = scmp.eq.s32.totalorder %s20, 1
      %p43 = por %p41, %p42
      %p45 = scmp.ne.s32.totalorder %s28, %s44
      %p46 = scmp.eq.s32.totalorder %s20, 0
      %p47 = por %p45, %p46
      %s49 = sadd.s32 %s48, 1
      %p52 = scmp.eq.s32.totalorder %s14, 1
      %p53 = scmp.ne.s32.totalorder %s48, %s50
      %p54 = scmp.eq.s32.totalorder %s14, 0
      %p55 = por %p53, %p54
      %p56 = scmp.ne.s32.totalorder %s48, %s50
      %p57 = scmp.eq.s32.totalorder %s19, 1
      %p58 = por %p56, %p57
      %p59 = scmp.ne.s32.totalorder %s50, %s51
      %p60 = scmp.eq.s32.totalorder %s19, 0
      %p61 = por %p59, %p60
      %p62 = scmp.ne.s32.totalorder %s50, %s51
      %p63 = scmp.eq.s32.totalorder %s20, 1
      %p64 = por %p62, %p63
      %p66 = scmp.ne.s32.totalorder %s51, %s65
      %p67 = scmp.eq.s32.totalorder %s20, 0
      %p68 = por %p66, %p67
      %s70 = sadd.s32 %s69, 1
      %p73 = scmp.eq.s32.totalorder %s14, 1
      %p74 = scmp.ne.s32.totalorder %s69, %s71
      %p75 = scmp.eq.s32.totalorder %s14, 0
      %p76 = por %p74, %p75
      %p77 = scmp.ne.s32.totalorder %s69, %s71
      %p78 = scmp.eq.s32.totalorder %s19, 1
      %p79 = por %p77, %p78
      %p80 = scmp.ne.s32.totalorder %s71, %s72
      %p81 = scmp.eq.s32.totalorder %s19, 0
      %p82 = por %p80, %p81
      %p83 = scmp.ne.s32.totalorder %s71, %s72
      %p84 = scmp.eq.s32.totalorder %s20, 1
      %p85 = por %p83, %p84
      %p87 = scmp.ne.s32.totalorder %s72, %s86
      %p88 = scmp.eq.s32.totalorder %s20, 0
      %p89 = por %p87, %p88
      %s91 = sadd.s32 %s90, 1
      %p94 = scmp.eq.s32.totalorder %s14, 1
      %p95 = scmp.ne.s32.totalorder %s90, %s92
      %p96 = scmp.eq.s32.totalorder %s14, 0
      %p97 = por %p95, %p96
      %p98 = scmp.ne.s32.totalorder %s90, %s92
      %p99 = scmp.eq.s32.totalorder %s19, 1
      %p100 = por %p98, %p99
      %p101 = scmp.ne.s32.totalorder %s92, %s93
      %p102 = scmp.eq.s32.totalorder %s19, 0
      %p103 = por %p101, %p102
      %p104 = scmp.ne.s32.totalorder %s92, %s93
      %p105 = scmp.eq.s32.totalorder %s20, 1
      %p106 = por %p104, %p105
      %p108 = scmp.ne.s32.totalorder %s93, %s107
      %p109 = scmp.eq.s32.totalorder %s20, 0
      %p110 = por %p108, %p109
      %s112 = sadd.s32 %s111, 1
      %p115 = scmp.eq.s32.totalorder %s14, 1
      %p116 = scmp.ne.s32.totalorder %s111, %s113
      %p117 = scmp.eq.s32.totalorder %s14, 0
      %p118 = por %p116, %p117
      %p119 = scmp.ne.s32.totalorder %s111, %s113
      %p120 = scmp.eq.s32.totalorder %s19, 1
      %p121 = por %p119, %p120
      %p122 = scmp.ne.s32.totalorder %s113, %s114
      %p123 = scmp.eq.s32.totalorder %s19, 0
      %p124 = por %p122, %p123
      %p125 = scmp.ne.s32.totalorder %s113, %s114
      %p126 = scmp.eq.s32.totalorder %s20, 1
      %p127 = por %p125, %p126
      %p129 = scmp.ne.s32.totalorder %s114, %s128
      %p130 = scmp.eq.s32.totalorder %s20, 0
      %p131 = por %p129, %p130
      %s132 = ssub.s32 %s14, %s21
      %p133 = scmp.eq.s32.totalorder %s132, 0
      %s135 = sadd.s32 %s134, 1
      %s136 = scalar_select %p133, %s134, %s135
      %p139 = pneg %p133
      %p140 = scmp.eq.s32.totalorder %s14, 1
      %p141 = por %p139, %p140
      %p142 = scmp.ne.s32.totalorder %s134, %s137
      %p143 = scmp.eq.s32.totalorder %s14, 0
      %p144 = por %p142, %p143
      %p145 = scmp.ne.s32.totalorder %s134, %s137
      %p146 = scmp.eq.s32.totalorder %s19, 1
      %p147 = por %p145, %p146
      %p148 = scmp.ne.s32.totalorder %s137, %s138
      %p149 = scmp.eq.s32.totalorder %s19, 0
      %p150 = por %p148, %p149
      %p151 = scmp.ne.s32.totalorder %s137, %s138
      %p152 = scmp.eq.s32.totalorder %s20, 1
      %p153 = por %p151, %p152
      %p155 = scmp.ne.s32.totalorder %s138, %s154
      %p156 = scmp.eq.s32.totalorder %s20, 0
      %p157 = por %p155, %p156
      %p158 = scmp.le.s32.totalorder 1, %s14
      %p159 = scmp.lt.s32.totalorder %s14, 3
      %p160 = pnand %p158, %p159
      %p161 = pneg %p160
      // Predicated region
      $region9: #{tpu_custom_call.1} parent=5 // pred_check
        _
      $region10: #{tpu_custom_call.1} parent=5 // pred_check_branch
        %163 = sbr.rel (%p160) target = $region12
      $region11: #{tpu_custom_call.1} parent=5 // pred_region
        %s164 = ssub.s32 %s14, 1
        // Predicated region
        $region13: #{tpu_custom_call.1} parent=11 // pred_check
          %p165 = pneg %p61
        $region14: #{tpu_custom_call.1} parent=11 // pred_check_branch
          %167 = sbr.rel (%p165) target = $region16
        $region15: #{tpu_custom_call.1} parent=11 // pred_region
          _
        $region16: #{tpu_custom_call.1} parent=11 // pred_fallthru
          _
        // Predicated region
        $region17: #{tpu_custom_call.1} parent=11 // pred_check
          %p168 = pneg %p82
        $region18: #{tpu_custom_call.1} parent=11 // pred_check_branch
          %170 = sbr.rel (%p168) target = $region20
        $region19: #{tpu_custom_call.1} parent=11 // pred_region
          _
        $region20: #{tpu_custom_call.1} parent=11 // pred_fallthru
          _
        // Predicated region
        $region21: #{tpu_custom_call.1} parent=11 // pred_check
          %p171 = pneg %p103
        $region22: #{tpu_custom_call.1} parent=11 // pred_check_branch
          %173 = sbr.rel (%p171) target = $region24
        $region23: #{tpu_custom_call.1} parent=11 // pred_region
          _
        $region24: #{tpu_custom_call.1} parent=11 // pred_fallthru
          _
        // Predicated region
        $region25: #{tpu_custom_call.1} parent=11 // pred_check
          %p174 = pneg %p124
        $region26: #{tpu_custom_call.1} parent=11 // pred_check_branch
          %176 = sbr.rel (%p174) target = $region28
        $region27: #{tpu_custom_call.1} parent=11 // pred_region
          _
        $region28: #{tpu_custom_call.1} parent=11 // pred_fallthru
          _
      $region12: #{tpu_custom_call.1} parent=5 // pred_fallthru
        _
      %p177 = scmp.lt.s32.totalorder %s14, 2
      // Predicated region
      $region29: #{tpu_custom_call.1} parent=5 // pred_check
        %p178 = pneg %p177
      $region30: #{tpu_custom_call.1} parent=5 // pred_check_branch
        %180 = sbr.rel (%p178) target = $region32
      $region31: #{tpu_custom_call.1} parent=5 // pred_region
        // Predicated region
        $region33: #{tpu_custom_call.1} parent=31 // pred_check
          %p181 = pneg %p34
        $region34: #{tpu_custom_call.1} parent=31 // pred_check_branch
          %183 = sbr.rel (%p181) target = $region36
        $region35: #{tpu_custom_call.1} parent=31 // pred_region
          %p184 = scmp.lt.s32.totalorder %s14, 1
          %s185 = scalar_select %p184, %s14, 1
          %s186 = smul.addr %s185, 2
          %s187 = smul.addr %s186, 2
          %s188 = scalar_lea.vmem %s0, %s187
        $region36: #{tpu_custom_call.1} parent=31 // pred_fallthru
          _
      $region32: #{tpu_custom_call.1} parent=5 // pred_fallthru
        _
      %p189 = scmp.le.s32.totalorder 1, %s14
      %p190 = scmp.lt.s32.totalorder %s14, 3
      %p191 = pnand %p189, %p190
      %p192 = pneg %p191
      // Predicated region
      $region37: #{tpu_custom_call.1} parent=5 // pred_check
        _
      $region38: #{tpu_custom_call.1} parent=5 // pred_check_branch
        %194 = sbr.rel (%p191) target = $region40
      $region39: #{tpu_custom_call.1} parent=5 // pred_region
        %s195 = ssub.s32 %s14, 1
        %p196 = scmp.lt.s32.totalorder %s19, 1
        %s197 = scalar_select %p196, %s19, 1
        %s198 = smul.addr %s197, 2
        %s199 = smul.addr %s198, 2
        %s200 = scalar_lea.vmem %s0, %s199
        %p201 = pneg %p40
        %p202 = pneg %p37
        %p203 = pneg %p61
        %p204 = pneg %p58
        %p205 = pneg %p82
        %p206 = pneg %p79
        %p207 = pneg %p103
        %p208 = pneg %p100
        %p209 = pneg %p124
        %p210 = pneg %p121
        %p211 = pneg %p150
        %p212 = pneg %p147
        %s213 = sand.u32 %s137, 1
        %s214 = scalar_lea.sflag [#allocation3], %s213
        %s215 = sand.u32 %s137, 1
        %s216 = smul.addr %s215, 16
        %s217 = scalar_lea.vmem [#allocation2], %s216
        %p218 = scmp.lt.s32.totalorder %s19, 1
        %s219 = scalar_select %p218, %s19, 1
        %s220 = smul.addr %s219, 2
        %s221 = smul.addr %s220, 2
        %s222 = scalar_lea.vmem %s0, %s221
        %v225 = vld [vmem:[%s222] sm:$0xf]
        %v226 = vld [vmem:[%s1] sm:$0xff]
        %v227 = vld [vmem:[%s1 + $0x8] sm:$0xff]
        %v228 = vpack.c.bf16 %v227, %v226
        %v229 = vld [vmem:[%s2] sm:$0xff]
        %v230 = vld [vmem:[%s2 + $0x8] sm:$0xff]
        %232 = vset.pattern.permute.xlu0 0
        %233 = vperm.xlu0 %232, %v229
        %v234 = vpop.permute.xlu0 %233
        %237 = vset.pattern.permute.xlu0 0
        %238 = vperm.xlu0 %237, %v230
        %v239 = vpop.permute.xlu0 %238
        %v243 = vunpack.c.l.s4 1983009808
        %v244 = vunpack.c.0.s8 %v243
        %v245 = vlaneseq
        %v246 = vshrl.u32 %v245, 7
        %v247 = vsub.s32 %v244, %v246
        %v248 = vrot.slane %v225, %v247
        %v249 = vcombine.high %v248, %v248
        %vm250 = vcmask 31744
        %v252 = vsel %vm250, %v228, 0
        %vm254 = vcmask 1041408
        %v256 = vsel %vm254, %v248, 0
        %v259 = vsel %vm254, %v249, 0
        %261 = vmatprep.subr.bf16.mxu0 0
        %262 = vmatpush1.bf16.msra.mxu0 0
        %263 = vmatprep.subr.bf16.mxu0 0
        %264 = vmatpush1.bf16.msra.mxu0 0
        %265 = vmatprep.subr.bf16.mxu0 0
        %266 = vmatpush1.bf16.msra.mxu0 0
        %267 = vmatprep.subr.bf16.mxu0 0
        %268 = vmatpush1.bf16.msra.mxu0 0
        %269 = vmatprep.subr.bf16.mxu0 0
        %270 = vmatpush1.bf16.msra.mxu0 0
        %271 = vmatprep.subr.bf16.mxu0 0
        %272 = vmatpush1.bf16.msra.mxu0 0
        %273 = vmatprep.subr.bf16.mxu0 0
        %274 = vmatpush1.bf16.msra.mxu0 0
        %275 = vmatprep.subr.bf16.mxu0 %v259
        %276 = vmatpush1.bf16.msra.mxu0 %v256
        %277 = vmatprep.subr.bf16.mxu0 0
        %278 = vmatpush2.bf16.msra.mxu0 0
        %279 = vmatprep.subr.bf16.mxu0 0
        %280 = vmatpush2.bf16.msra.mxu0 0
        %281 = vmatprep.subr.bf16.mxu0 0
        %282 = vmatpush2.bf16.msra.mxu0 0
        %283 = vmatprep.subr.bf16.mxu0 0
        %284 = vmatpush2.bf16.msra.mxu0 0
        %285 = vmatprep.subr.bf16.mxu0 0
        %286 = vmatpush2.bf16.msra.mxu0 0
        %287 = vmatprep.subr.bf16.mxu0 0
        %288 = vmatpush2.bf16.msra.mxu0 0
        %289 = vmatprep.subr.bf16.mxu0 0
        %290 = vmatpush2.bf16.msra.mxu0 0
        %291 = vmatprep.subr.bf16.mxu0 0
        %292 = vmatpush2.bf16.msra.mxu0 0
        %293 = vmatprep.mubr.bf16.mxu0 0
        %294 = vmatmul.mubr.bf16.gmra.mxu0 %v252
        %v295 = vpop.f32.mrf.mxu0
        %v296 = vadd.f32 %v234, %v295
        %v297 = vpop.f32.mrf.mxu0
        %v298 = vadd.f32 %v234, %v297
        %v299 = vpop.f32.mrf.mxu0
        %v300 = vadd.f32 %v239, %v299
        %v301 = vpop.f32.mrf.mxu0
        %v302 = vadd.f32 %v239, %v301
        %303 = vdwg.mxu0
        %v304 = vpack.c.bf16 %v300, %v296
        %v305 = vpack.c.bf16 %v302, %v298
        %v306 = vld [vmem:[%s1 + $0x10] sm:$0xff]
        %v307 = vld [vmem:[%s1 + $0x18] sm:$0xff]
        %v308 = vpack.c.bf16 %v307, %v306
        %v309 = vld [vmem:[%s2 + $0x10] sm:$0xff]
        %v310 = vld [vmem:[%s2 + $0x18] sm:$0xff]
        %312 = vset.pattern.permute.xlu0 0
        %313 = vperm.xlu0 %312, %v309
        %v314 = vpop.permute.xlu0 %313
        %317 = vset.pattern.permute.xlu0 0
        %318 = vperm.xlu0 %317, %v310
        %v319 = vpop.permute.xlu0 %318
        %v322 = vsel %vm250, %v308, 0
        %324 = vmatprep.subr.bf16.mxu0 0
        %325 = vmatpush1.bf16.msra.mxu0 0
        %326 = vmatprep.subr.bf16.mxu0 0
        %327 = vmatpush1.bf16.msra.mxu0 0
        %328 = vmatprep.subr.bf16.mxu0 0
        %329 = vmatpush1.bf16.msra.mxu0 0
        %330 = vmatprep.subr.bf16.mxu0 0
        %331 = vmatpush1.bf16.msra.mxu0 0
        %332 = vmatprep.subr.bf16.mxu0 0
        %333 = vmatpush1.bf16.msra.mxu0 0
        %334 = vmatprep.subr.bf16.mxu0 0
        %335 = vmatpush1.bf16.msra.mxu0 0
        %336 = vmatprep.subr.bf16.mxu0 0
        %337 = vmatpush1.bf16.msra.mxu0 0
        %338 = vmatprep.subr.bf16.mxu0 %v259
        %339 = vmatpush1.bf16.msra.mxu0 %v256
        %340 = vmatprep.subr.bf16.mxu0 0
        %341 = vmatpush2.bf16.msra.mxu0 0
        %342 = vmatprep.subr.bf16.mxu0 0
        %343 = vmatpush2.bf16.msra.mxu0 0
        %344 = vmatprep.subr.bf16.mxu0 0
        %345 = vmatpush2.bf16.msra.mxu0 0
        %346 = vmatprep.subr.bf16.mxu0 0
        %347 = vmatpush2.bf16.msra.mxu0 0
        %348 = vmatprep.subr.bf16.mxu0 0
        %349 = vmatpush2.bf16.msra.mxu0 0
        %350 = vmatprep.subr.bf16.mxu0 0
        %351 = vmatpush2.bf16.msra.mxu0 0
        %352 = vmatprep.subr.bf16.mxu0 0
        %353 = vmatpush2.bf16.msra.mxu0 0
        %354 = vmatprep.subr.bf16.mxu0 0
        %355 = vmatpush2.bf16.msra.mxu0 0
        %356 = vmatprep.mubr.bf16.mxu0 0
        %357 = vmatmul.mubr.bf16.gmra.mxu0 %v322
        %v358 = vpop.f32.mrf.mxu0
        %v359 = vadd.f32 %v314, %v358
        %v360 = vpop.f32.mrf.mxu0
        %v361 = vadd.f32 %v314, %v360
        %v362 = vpop.f32.mrf.mxu0
        %v363 = vadd.f32 %v319, %v362
        %v364 = vpop.f32.mrf.mxu0
        %v365 = vadd.f32 %v319, %v364
        %366 = vdwg.mxu0
        %v367 = vpack.c.bf16 %v363, %v359
        %v368 = vpack.c.bf16 %v365, %v361
        %v369 = vld [vmem:[%s1 + $0x20] sm:$0xff]
        %v370 = vpack.c.bf16 %v369, %v369
        %v371 = vld [vmem:[%s2 + $0x20] sm:$0xff]
        %373 = vset.pattern.permute.xlu0 0
        %374 = vperm.xlu0 %373, %v371
        %v375 = vpop.permute.xlu0 %374
        %v378 = vsel %vm250, %v370, 0
        %380 = vmatprep.subr.bf16.mxu0 0
        %381 = vmatpush1.bf16.msra.mxu0 0
        %382 = vmatprep.subr.bf16.mxu0 0
        %383 = vmatpush1.bf16.msra.mxu0 0
        %384 = vmatprep.subr.bf16.mxu0 0
        %385 = vmatpush1.bf16.msra.mxu0 0
        %386 = vmatprep.subr.bf16.mxu0 0
        %387 = vmatpush1.bf16.msra.mxu0 0
        %388 = vmatprep.subr.bf16.mxu0 0
        %389 = vmatpush1.bf16.msra.mxu0 0
        %390 = vmatprep.subr.bf16.mxu0 0
        %391 = vmatpush1.bf16.msra.mxu0 0
        %392 = vmatprep.subr.bf16.mxu0 0
        %393 = vmatpush1.bf16.msra.mxu0 0
        %394 = vmatprep.subr.bf16.mxu0 %v259
        %395 = vmatpush1.bf16.msra.mxu0 %v256
        %396 = vmatprep.subr.bf16.mxu0 0
        %397 = vmatpush2.bf16.msra.mxu0 0
        %398 = vmatprep.subr.bf16.mxu0 0
        %399 = vmatpush2.bf16.msra.mxu0 0
        %400 = vmatprep.subr.bf16.mxu0 0
        %401 = vmatpush2.bf16.msra.mxu0 0
        %402 = vmatprep.subr.bf16.mxu0 0
        %403 = vmatpush2.bf16.msra.mxu0 0
        %404 = vmatprep.subr.bf16.mxu0 0
        %405 = vmatpush2.bf16.msra.mxu0 0
        %406 = vmatprep.subr.bf16.mxu0 0
        %407 = vmatpush2.bf16.msra.mxu0 0
        %408 = vmatprep.subr.bf16.mxu0 0
        %409 = vmatpush2.bf16.msra.mxu0 0
        %410 = vmatprep.subr.bf16.mxu0 0
        %411 = vmatpush2.bf16.msra.mxu0 0
        %412 = vmatprep.mubr.bf16.mxu0 0
        %413 = vmatmul.mubr.bf16.gmra.mxu0 %v378
        %v414 = vpop.f32.mrf.mxu0
        %v415 = vadd.f32 %v375, %v414
        %v416 = vpop.f32.mrf.mxu0
        %v417 = vadd.f32 %v375, %v416
        %v418 = vpop.f32.mrf.mxu0
        %v419 = vpop.f32.mrf.mxu0
        %420 = vdwg.mxu0
        %421 = vxpose.xlu0.c.b16.start [1/8] %v367, 128
        %422 = vxpose.xlu0.c.b16.cont [2/8] 0, 128
        %423 = vxpose.xlu0.c.b16.cont [3/8] 0, 128
        %424 = vxpose.xlu0.c.b16.cont [4/8] 0, 128
        %425 = vxpose.xlu0.c.b16.cont [5/8] 0, 128
        %426 = vxpose.xlu0.c.b16.cont [6/8] 0, 128
        %427 = vxpose.xlu0.c.b16.cont [7/8] 0, 128
        %428 = vxpose.xlu0.c.b16.end [8/8] 0, 128
        %v429 = vpop.trf.xlu0
        %v430 = vpop.trf.xlu0
        %v431 = vpop.trf.xlu0
        %v432 = vpop.trf.xlu0
        %v433 = vpop.trf.xlu0
        %v434 = vpop.trf.xlu0
        %v435 = vpop.trf.xlu0
        %v436 = vpop.trf.xlu0
        %437 = vxpose.xlu0.c.b16.start [1/8] %v368, 128
        %438 = vxpose.xlu0.c.b16.cont [2/8] 0, 128
        %439 = vxpose.xlu0.c.b16.cont [3/8] 0, 128
        %440 = vxpose.xlu0.c.b16.cont [4/8] 0, 128
        %441 = vxpose.xlu0.c.b16.cont [5/8] 0, 128
        %442 = vxpose.xlu0.c.b16.cont [6/8] 0, 128
        %443 = vxpose.xlu0.c.b16.cont [7/8] 0, 128
        %444 = vxpose.xlu0.c.b16.end [8/8] 0, 128
        %v445 = vpop.trf.xlu0
        %v446 = vpop.trf.xlu0
        %v447 = vpop.trf.xlu0
        %v448 = vpop.trf.xlu0
        %v449 = vpop.trf.xlu0
        %v450 = vpop.trf.xlu0
        %v451 = vpop.trf.xlu0
        %v452 = vpop.trf.xlu0
        %vm453 = vcmask 130048
        %v455 = vsel %vm453, %v429, 0
        %v458 = vsel %vm453, %v430, 0
        %v461 = vsel %vm453, %v431, 0
        %v464 = vsel %vm453, %v432, 0
        %v467 = vsel %vm453, %v433, 0
        %v470 = vsel %vm453, %v434, 0
        %v473 = vsel %vm453, %v435, 0
        %v476 = vsel %vm453, %v436, 0
        %v479 = vsel %vm453, %v445, 0
        %v482 = vsel %vm453, %v446, 0
        %v485 = vsel %vm453, %v447, 0
        %v488 = vsel %vm453, %v448, 0
        %v491 = vsel %vm453, %v449, 0
        %v494 = vsel %vm453, %v450, 0
        %v497 = vsel %vm453, %v451, 0
        %v500 = vsel %vm453, %v452, 0
        %502 = vmatprep.subr.bf16.mxu0 0
        %503 = vmatpush1.bf16.msra.mxu0 0
        %504 = vmatprep.subr.bf16.mxu0 0
        %505 = vmatpush1.bf16.msra.mxu0 0
        %506 = vmatprep.subr.bf16.mxu0 0
        %507 = vmatpush1.bf16.msra.mxu0 0
        %508 = vmatprep.subr.bf16.mxu0 0
        %509 = vmatpush1.bf16.msra.mxu0 0
        %510 = vmatprep.subr.bf16.mxu0 0
        %511 = vmatpush1.bf16.msra.mxu0 0
        %512 = vmatprep.subr.bf16.mxu0 0
        %513 = vmatpush1.bf16.msra.mxu0 0
        %514 = vmatprep.subr.bf16.mxu0 0
        %515 = vmatpush1.bf16.msra.mxu0 0
        %516 = vmatprep.subr.bf16.mxu0 %v305
        %517 = vmatpush1.bf16.msra.mxu0 %v304
        %518 = vmatprep.subr.bf16.mxu0 0
        %519 = vmatpush2.bf16.msra.mxu0 0
        %520 = vmatprep.subr.bf16.mxu0 0
        %521 = vmatpush2.bf16.msra.mxu0 0
        %522 = vmatprep.subr.bf16.mxu0 0
        %523 = vmatpush2.bf16.msra.mxu0 0
        %524 = vmatprep.subr.bf16.mxu0 0
        %525 = vmatpush2.bf16.msra.mxu0 0
        %526 = vmatprep.subr.bf16.mxu0 0
        %527 = vmatpush2.bf16.msra.mxu0 0
        %528 = vmatprep.subr.bf16.mxu0 0
        %529 = vmatpush2.bf16.msra.mxu0 0
        %530 = vmatprep.subr.bf16.mxu0 0
        %531 = vmatpush2.bf16.msra.mxu0 0
        %532 = vmatprep.subr.bf16.mxu0 0
        %533 = vmatpush2.bf16.msra.mxu0 0
        %534 = vmatprep.mubr.bf16.mxu0 0
        %535 = vmatmul.mubr.bf16.gmra.mxu0 %v455
        %v536 = vpop.f32.mrf.mxu0
        %v537 = vadd.f32 0.0, %v536
        %v538 = vpop.f32.mrf.mxu0
        %v539 = vadd.f32 0.0, %v538
        %v540 = vpop.f32.mrf.mxu0
        %v541 = vadd.f32 0.0, %v540
        %v542 = vpop.f32.mrf.mxu0
        %v543 = vadd.f32 0.0, %v542
        %544 = vmatprep.mubr.bf16.mxu0 0
        %545 = vmatmul.mubr.bf16.gmra.mxu0 %v458
        %v546 = vpop.f32.mrf.mxu0
        %v547 = vadd.f32 0.0, %v546
        %v548 = vpop.f32.mrf.mxu0
        %v549 = vadd.f32 0.0, %v548
        %v550 = vpop.f32.mrf.mxu0
        %v551 = vadd.f32 0.0, %v550
        %v552 = vpop.f32.mrf.mxu0
        %v553 = vadd.f32 0.0, %v552
        %554 = vmatprep.mubr.bf16.mxu0 0
        %555 = vmatmul.mubr.bf16.gmra.mxu0 %v461
        %v556 = vpop.f32.mrf.mxu0
        %v557 = vadd.f32 0.0, %v556
        %v558 = vpop.f32.mrf.mxu0
        %v559 = vadd.f32 0.0, %v558
        %v560 = vpop.f32.mrf.mxu0
        %v561 = vadd.f32 0.0, %v560
        %v562 = vpop.f32.mrf.mxu0
        %v563 = vadd.f32 0.0, %v562
        %564 = vmatprep.mubr.bf16.mxu0 0
        %565 = vmatmul.mubr.bf16.gmra.mxu0 %v464
        %v566 = vpop.f32.mrf.mxu0
        %v567 = vadd.f32 0.0, %v566
        %v568 = vpop.f32.mrf.mxu0
        %v569 = vadd.f32 0.0, %v568
        %v570 = vpop.f32.mrf.mxu0
        %v571 = vadd.f32 0.0, %v570
        %v572 = vpop.f32.mrf.mxu0
        %v573 = vadd.f32 0.0, %v572
        %574 = vmatprep.mubr.bf16.mxu0 0
        %575 = vmatmul.mubr.bf16.gmra.mxu0 %v467
        %v576 = vpop.f32.mrf.mxu0
        %v577 = vadd.f32 0.0, %v576
        %v578 = vpop.f32.mrf.mxu0
        %v579 = vadd.f32 0.0, %v578
        %v580 = vpop.f32.mrf.mxu0
        %v581 = vadd.f32 0.0, %v580
        %v582 = vpop.f32.mrf.mxu0
        %v583 = vadd.f32 0.0, %v582
        %584 = vmatprep.mubr.bf16.mxu0 0
        %585 = vmatmul.mubr.bf16.gmra.mxu0 %v470
        %v586 = vpop.f32.mrf.mxu0
        %v587 = vadd.f32 0.0, %v586
        %v588 = vpop.f32.mrf.mxu0
        %v589 = vadd.f32 0.0, %v588
        %v590 = vpop.f32.mrf.mxu0
        %v591 = vadd.f32 0.0, %v590
        %v592 = vpop.f32.mrf.mxu0
        %v593 = vadd.f32 0.0, %v592
        %594 = vmatprep.mubr.bf16.mxu0 0
        %595 = vmatmul.mubr.bf16.gmra.mxu0 %v473
        %v596 = vpop.f32.mrf.mxu0
        %v597 = vadd.f32 0.0, %v596
        %v598 = vpop.f32.mrf.mxu0
        %v599 = vadd.f32 0.0, %v598
        %v600 = vpop.f32.mrf.mxu0
        %v601 = vadd.f32 0.0, %v600
        %v602 = vpop.f32.mrf.mxu0
        %v603 = vadd.f32 0.0, %v602
        %604 = vmatprep.mubr.bf16.mxu0 0
        %605 = vmatmul.mubr.bf16.gmra.mxu0 %v476
        %v606 = vpop.f32.mrf.mxu0
        %v607 = vadd.f32 0.0, %v606
        %v608 = vpop.f32.mrf.mxu0
        %v609 = vadd.f32 0.0, %v608
        %v610 = vpop.f32.mrf.mxu0
        %v611 = vadd.f32 0.0, %v610
        %v612 = vpop.f32.mrf.mxu0
        %v613 = vadd.f32 0.0, %v612
        %614 = vmatprep.mubr.bf16.mxu0 0
        %615 = vmatmul.mubr.bf16.gmra.mxu0 %v479
        %v616 = vpop.f32.mrf.mxu0
        %v617 = vadd.f32 0.0, %v616
        %v618 = vpop.f32.mrf.mxu0
        %v619 = vadd.f32 0.0, %v618
        %v620 = vpop.f32.mrf.mxu0
        %v621 = vadd.f32 0.0, %v620
        %v622 = vpop.f32.mrf.mxu0
        %v623 = vadd.f32 0.0, %v622
        %624 = vmatprep.mubr.bf16.mxu0 0
        %625 = vmatmul.mubr.bf16.gmra.mxu0 %v482
        %v626 = vpop.f32.mrf.mxu0
        %v627 = vadd.f32 0.0, %v626
        %v628 = vpop.f32.mrf.mxu0
        %v629 = vadd.f32 0.0, %v628
        %v630 = vpop.f32.mrf.mxu0
        %v631 = vadd.f32 0.0, %v630
        %v632 = vpop.f32.mrf.mxu0
        %v633 = vadd.f32 0.0, %v632
        %634 = vmatprep.mubr.bf16.mxu0 0
        %635 = vmatmul.mubr.bf16.gmra.mxu0 %v485
        %v636 = vpop.f32.mrf.mxu0
        %v637 = vadd.f32 0.0, %v636
        %v638 = vpop.f32.mrf.mxu0
        %v639 = vadd.f32 0.0, %v638
        %v640 = vpop.f32.mrf.mxu0
        %v641 = vadd.f32 0.0, %v640
        %v642 = vpop.f32.mrf.mxu0
        %v643 = vadd.f32 0.0, %v642
        %644 = vmatprep.mubr.bf16.mxu0 0
        %645 = vmatmul.mubr.bf16.gmra.mxu0 %v488
        %v646 = vpop.f32.mrf.mxu0
        %v647 = vadd.f32 0.0, %v646
        %v648 = vpop.f32.mrf.mxu0
        %v649 = vadd.f32 0.0, %v648
        %v650 = vpop.f32.mrf.mxu0
        %v651 = vadd.f32 0.0, %v650
        %v652 = vpop.f32.mrf.mxu0
        %v653 = vadd.f32 0.0, %v652
        %654 = vmatprep.mubr.bf16.mxu0 0
        %655 = vmatmul.mubr.bf16.gmra.mxu0 %v491
        %v656 = vpop.f32.mrf.mxu0
        %v657 = vadd.f32 0.0, %v656
        %v658 = vpop.f32.mrf.mxu0
        %v659 = vadd.f32 0.0, %v658
        %v660 = vpop.f32.mrf.mxu0
        %v661 = vadd.f32 0.0, %v660
        %v662 = vpop.f32.mrf.mxu0
        %v663 = vadd.f32 0.0, %v662
        %664 = vmatprep.mubr.bf16.mxu0 0
        %665 = vmatmul.mubr.bf16.gmra.mxu0 %v494
        %v666 = vpop.f32.mrf.mxu0
        %v667 = vadd.f32 0.0, %v666
        %v668 = vpop.f32.mrf.mxu0
        %v669 = vadd.f32 0.0, %v668
        %v670 = vpop.f32.mrf.mxu0
        %v671 = vadd.f32 0.0, %v670
        %v672 = vpop.f32.mrf.mxu0
        %v673 = vadd.f32 0.0, %v672
        %674 = vmatprep.mubr.bf16.mxu0 0
        %675 = vmatmul.mubr.bf16.gmra.mxu0 %v497
        %v676 = vpop.f32.mrf.mxu0
        %v677 = vadd.f32 0.0, %v676
        %v678 = vpop.f32.mrf.mxu0
        %v679 = vadd.f32 0.0, %v678
        %v680 = vpop.f32.mrf.mxu0
        %v681 = vadd.f32 0.0, %v680
        %v682 = vpop.f32.mrf.mxu0
        %v683 = vadd.f32 0.0, %v682
        %684 = vmatprep.mubr.bf16.mxu0 0
        %685 = vmatmul.mubr.bf16.gmra.mxu0 %v500
        %v686 = vpop.f32.mrf.mxu0
        %v687 = vadd.f32 0.0, %v686
        %v688 = vpop.f32.mrf.mxu0
        %v689 = vadd.f32 0.0, %v688
        %v690 = vpop.f32.mrf.mxu0
        %v691 = vadd.f32 0.0, %v690
        %v692 = vpop.f32.mrf.mxu0
        %v693 = vadd.f32 0.0, %v692
        %694 = vdwg.mxu0
        %v695 = vmax.f32 %v537, %v539
        %696 = vmax.xlane.f32.xlu0 %v695
        %v697 = vpop.xlane.xlu0 %696
        %v698 = vmax.f32 %v541, %v543
        %699 = vmax.xlane.f32.xlu0 %v698
        %v700 = vpop.xlane.xlu0 %699
        %v701 = vmax.f32 %v547, %v549
        %702 = vmax.xlane.f32.xlu0 %v701
        %v703 = vpop.xlane.xlu0 %702
        %v704 = vmax.f32 %v551, %v553
        %705 = vmax.xlane.f32.xlu0 %v704
        %v706 = vpop.xlane.xlu0 %705
        %v707 = vmax.f32 %v557, %v559
        %708 = vmax.xlane.f32.xlu0 %v707
        %v709 = vpop.xlane.xlu0 %708
        %v710 = vmax.f32 %v561, %v563
        %711 = vmax.xlane.f32.xlu0 %v710
        %v712 = vpop.xlane.xlu0 %711
        %v713 = vmax.f32 %v567, %v569
        %714 = vmax.xlane.f32.xlu0 %v713
        %v715 = vpop.xlane.xlu0 %714
        %v716 = vmax.f32 %v571, %v573
        %717 = vmax.xlane.f32.xlu0 %v716
        %v718 = vpop.xlane.xlu0 %717
        %v719 = vmax.f32 %v577, %v579
        %720 = vmax.xlane.f32.xlu0 %v719
        %v721 = vpop.xlane.xlu0 %720
        %v722 = vmax.f32 %v581, %v583
        %723 = vmax.xlane.f32.xlu0 %v722
        %v724 = vpop.xlane.xlu0 %723
        %v725 = vmax.f32 %v587, %v589
        %726 = vmax.xlane.f32.xlu0 %v725
        %v727 = vpop.xlane.xlu0 %726
        %v728 = vmax.f32 %v591, %v593
        %729 = vmax.xlane.f32.xlu0 %v728
        %v730 = vpop.xlane.xlu0 %729
        %v731 = vmax.f32 %v597, %v599
        %732 = vmax.xlane.f32.xlu0 %v731
        %v733 = vpop.xlane.xlu0 %732
        %v734 = vmax.f32 %v601, %v603
        %735 = vmax.xlane.f32.xlu0 %v734
        %v736 = vpop.xlane.xlu0 %735
        %v737 = vmax.f32 %v607, %v609
        %738 = vmax.xlane.f32.xlu0 %v737
        %v739 = vpop.xlane.xlu0 %738
        %v740 = vmax.f32 %v611, %v613
        %741 = vmax.xlane.f32.xlu0 %v740
        %v742 = vpop.xlane.xlu0 %741
        %v743 = vmax.f32 %v617, %v619
        %744 = vmax.xlane.f32.xlu0 %v743
        %v745 = vpop.xlane.xlu0 %744
        %v746 = vmax.f32 %v621, %v623
        %747 = vmax.xlane.f32.xlu0 %v746
        %v748 = vpop.xlane.xlu0 %747
        %v749 = vmax.f32 %v627, %v629
        %750 = vmax.xlane.f32.xlu0 %v749
        %v751 = vpop.xlane.xlu0 %750
        %v752 = vmax.f32 %v631, %v633
        %753 = vmax.xlane.f32.xlu0 %v752
        %v754 = vpop.xlane.xlu0 %753
        %v755 = vmax.f32 %v637, %v639
        %756 = vmax.xlane.f32.xlu0 %v755
        %v757 = vpop.xlane.xlu0 %756
        %v758 = vmax.f32 %v641, %v643
        %759 = vmax.xlane.f32.xlu0 %v758
        %v760 = vpop.xlane.xlu0 %759
        %v761 = vmax.f32 %v647, %v649
        %762 = vmax.xlane.f32.xlu0 %v761
        %v763 = vpop.xlane.xlu0 %762
        %v764 = vmax.f32 %v651, %v653
        %765 = vmax.xlane.f32.xlu0 %v764
        %v766 = vpop.xlane.xlu0 %765
        %v767 = vmax.f32 %v657, %v659
        %768 = vmax.xlane.f32.xlu0 %v767
        %v769 = vpop.xlane.xlu0 %768
        %v770 = vmax.f32 %v661, %v663
        %771 = vmax.xlane.f32.xlu0 %v770
        %v772 = vpop.xlane.xlu0 %771
        %v773 = vmax.f32 %v667, %v669
        %774 = vmax.xlane.f32.xlu0 %v773
        %v775 = vpop.xlane.xlu0 %774
        %v776 = vmax.f32 %v671, %v673
        %777 = vmax.xlane.f32.xlu0 %v776
        %v778 = vpop.xlane.xlu0 %777
        %v779 = vmax.f32 %v677, %v679
        %780 = vmax.xlane.f32.xlu0 %v779
        %v781 = vpop.xlane.xlu0 %780
        %v782 = vmax.f32 %v681, %v683
        %783 = vmax.xlane.f32.xlu0 %v782
        %v784 = vpop.xlane.xlu0 %783
        %v785 = vmax.f32 %v687, %v689
        %786 = vmax.xlane.f32.xlu0 %v785
        %v787 = vpop.xlane.xlu0 %786
        %v788 = vmax.f32 %v691, %v693
        %789 = vmax.xlane.f32.xlu0 %v788
        %v790 = vpop.xlane.xlu0 %789
        %v791 = vsub.f32 %v537, %v697
        %v792 = vsub.f32 %v539, %v697
        %v793 = vsub.f32 %v541, %v700
        %v794 = vsub.f32 %v543, %v700
        %v795 = vsub.f32 %v547, %v703
        %v796 = vsub.f32 %v549, %v703
        %v797 = vsub.f32 %v551, %v706
        %v798 = vsub.f32 %v553, %v706
        %v799 = vsub.f32 %v557, %v709
        %v800 = vsub.f32 %v559, %v709
        %v801 = vsub.f32 %v561, %v712
        %v802 = vsub.f32 %v563, %v712
        %v803 = vsub.f32 %v567, %v715
        %v804 = vsub.f32 %v569, %v715
        %v805 = vsub.f32 %v571, %v718
        %v806 = vsub.f32 %v573, %v718
        %v807 = vsub.f32 %v577, %v721
        %v808 = vsub.f32 %v579, %v721
        %v809 = vsub.f32 %v581, %v724
        %v810 = vsub.f32 %v583, %v724
        %v811 = vsub.f32 %v587, %v727
        %v812 = vsub.f32 %v589, %v727
        %v813 = vsub.f32 %v591, %v730
        %v814 = vsub.f32 %v593, %v730
        %v815 = vsub.f32 %v597, %v733
        %v816 = vsub.f32 %v599, %v733
        %v817 = vsub.f32 %v601, %v736
        %v818 = vsub.f32 %v603, %v736
        %v819 = vsub.f32 %v607, %v739
        %v820 = vsub.f32 %v609, %v739
        %v821 = vsub.f32 %v611, %v742
        %v822 = vsub.f32 %v613, %v742
        %v823 = vsub.f32 %v617, %v745
        %v824 = vsub.f32 %v619, %v745
        %v825 = vsub.f32 %v621, %v748
        %v826 = vsub.f32 %v623, %v748
        %v827 = vsub.f32 %v627, %v751
        %v828 = vsub.f32 %v629, %v751
        %v829 = vsub.f32 %v631, %v754
        %v830 = vsub.f32 %v633, %v754
        %v831 = vsub.f32 %v637, %v757
        %v832 = vsub.f32 %v639, %v757
        %v833 = vsub.f32 %v641, %v760
        %v834 = vsub.f32 %v643, %v760
        %v835 = vsub.f32 %v647, %v763
        %v836 = vsub.f32 %v649, %v763
        %v837 = vsub.f32 %v651, %v766
        %v838 = vsub.f32 %v653, %v766
        %v839 = vsub.f32 %v657, %v769
        %v840 = vsub.f32 %v659, %v769
        %v841 = vsub.f32 %v661, %v772
        %v842 = vsub.f32 %v663, %v772
        %v843 = vsub.f32 %v667, %v775
        %v844 = vsub.f32 %v669, %v775
        %v845 = vsub.f32 %v671, %v778
        %v846 = vsub.f32 %v673, %v778
        %v847 = vsub.f32 %v677, %v781
        %v848 = vsub.f32 %v679, %v781
        %v849 = vsub.f32 %v681, %v784
        %v850 = vsub.f32 %v683, %v784
        %v851 = vsub.f32 %v687, %v787
        %v852 = vsub.f32 %v689, %v787
        %v853 = vsub.f32 %v691, %v790
        %v854 = vsub.f32 %v693, %v790
        %v855 = vmul.f32 %v791, 1.442695
        %v856 = vpow.pop %v855
        %v857 = vmul.f32 %v792, 1.442695
        %v858 = vpow.pop %v857
        %v859 = vmul.f32 %v793, 1.442695
        %v860 = vpow.pop %v859
        %v861 = vmul.f32 %v794, 1.442695
        %v862 = vpow.pop %v861
        %v863 = vmul.f32 %v795, 1.442695
        %v864 = vpow.pop %v863
        %v865 = vmul.f32 %v796, 1.442695
        %v866 = vpow.pop %v865
        %v867 = vmul.f32 %v797, 1.442695
        %v868 = vpow.pop %v867
        %v869 = vmul.f32 %v798, 1.442695
        %v870 = vpow.pop %v869
        %v871 = vmul.f32 %v799, 1.442695
        %v872 = vpow.pop %v871
        %v873 = vmul.f32 %v800, 1.442695
        %v874 = vpow.pop %v873
        %v875 = vmul.f32 %v801, 1.442695
        %v876 = vpow.pop %v875
        %v877 = vmul.f32 %v802, 1.442695
        %v878 = vpow.pop %v877
        %v879 = vmul.f32 %v803, 1.442695
        %v880 = vpow.pop %v879
        %v881 = vmul.f32 %v804, 1.442695
        %v882 = vpow.pop %v881
        %v883 = vmul.f32 %v805, 1.442695
        %v884 = vpow.pop %v883
        %v885 = vmul.f32 %v806, 1.442695
        %v886 = vpow.pop %v885
        %v887 = vmul.f32 %v807, 1.442695
        %v888 = vpow.pop %v887
        %v889 = vmul.f32 %v808, 1.442695
        %v890 = vpow.pop %v889
        %v891 = vmul.f32 %v809, 1.442695
        %v892 = vpow.pop %v891
        %v893 = vmul.f32 %v810, 1.442695
        %v894 = vpow.pop %v893
        %v895 = vmul.f32 %v811, 1.442695
        %v896 = vpow.pop %v895
        %v897 = vmul.f32 %v812, 1.442695
        %v898 = vpow.pop %v897
        %v899 = vmul.f32 %v813, 1.442695
        %v900 = vpow.pop %v899
        %v901 = vmul.f32 %v814, 1.442695
        %v902 = vpow.pop %v901
        %v903 = vmul.f32 %v815, 1.442695
        %v904 = vpow.pop %v903
        %v905 = vmul.f32 %v816, 1.442695
        %v906 = vpow.pop %v905
        %v907 = vmul.f32 %v817, 1.442695
        %v908 = vpow.pop %v907
        %v909 = vmul.f32 %v818, 1.442695
        %v910 = vpow.pop %v909
        %v911 = vmul.f32 %v819, 1.442695
        %v912 = vpow.pop %v911
        %v913 = vmul.f32 %v820, 1.442695
        %v914 = vpow.pop %v913
        %v915 = vmul.f32 %v821, 1.442695
        %v916 = vpow.pop %v915
        %v917 = vmul.f32 %v822, 1.442695
        %v918 = vpow.pop %v917
        %v919 = vmul.f32 %v823, 1.442695
        %v920 = vpow.pop %v919
        %v921 = vmul.f32 %v824, 1.442695
        %v922 = vpow.pop %v921
        %v923 = vmul.f32 %v825, 1.442695
        %v924 = vpow.pop %v923
        %v925 = vmul.f32 %v826, 1.442695
        %v926 = vpow.pop %v925
        %v927 = vmul.f32 %v827, 1.442695
        %v928 = vpow.pop %v927
        %v929 = vmul.f32 %v828, 1.442695
        %v930 = vpow.pop %v929
        %v931 = vmul.f32 %v829, 1.442695
        %v932 = vpow.pop %v931
        %v933 = vmul.f32 %v830, 1.442695
        %v934 = vpow.pop %v933
        %v935 = vmul.f32 %v831, 1.442695
        %v936 = vpow.pop %v935
        %v937 = vmul.f32 %v832, 1.442695
        %v938 = vpow.pop %v937
        %v939 = vmul.f32 %v833, 1.442695
        %v940 = vpow.pop %v939
        %v941 = vmul.f32 %v834, 1.442695
        %v942 = vpow.pop %v941
        %v943 = vmul.f32 %v835, 1.442695
        %v944 = vpow.pop %v943
        %v945 = vmul.f32 %v836, 1.442695
        %v946 = vpow.pop %v945
        %v947 = vmul.f32 %v837, 1.442695
        %v948 = vpow.pop %v947
        %v949 = vmul.f32 %v838, 1.442695
        %v950 = vpow.pop %v949
        %v951 = vmul.f32 %v839, 1.442695
        %v952 = vpow.pop %v951
        %v953 = vmul.f32 %v840, 1.442695
        %v954 = vpow.pop %v953
        %v955 = vmul.f32 %v841, 1.442695
        %v956 = vpow.pop %v955
        %v957 = vmul.f32 %v842, 1.442695
        %v958 = vpow.pop %v957
        %v959 = vmul.f32 %v843, 1.442695
        %v960 = vpow.pop %v959
        %v961 = vmul.f32 %v844, 1.442695
        %v962 = vpow.pop %v961
        %v963 = vmul.f32 %v845, 1.442695
        %v964 = vpow.pop %v963
        %v965 = vmul.f32 %v846, 1.442695
        %v966 = vpow.pop %v965
        %v967 = vmul.f32 %v847, 1.442695
        %v968 = vpow.pop %v967
        %v969 = vmul.f32 %v848, 1.442695
        %v970 = vpow.pop %v969
        %v971 = vmul.f32 %v849, 1.442695
        %v972 = vpow.pop %v971
        %v973 = vmul.f32 %v850, 1.442695
        %v974 = vpow.pop %v973
        %v975 = vmul.f32 %v851, 1.442695
        %v976 = vpow.pop %v975
        %v977 = vmul.f32 %v852, 1.442695
        %v978 = vpow.pop %v977
        %v979 = vmul.f32 %v853, 1.442695
        %v980 = vpow.pop %v979
        %v981 = vmul.f32 %v854, 1.442695
        %v982 = vpow.pop %v981
        %v983 = vpack.c.bf16 %v860, %v856
        %v984 = vpack.c.bf16 %v862, %v858
        %v985 = vpack.c.bf16 %v868, %v864
        %v986 = vpack.c.bf16 %v870, %v866
        %v987 = vpack.c.bf16 %v876, %v872
        %v988 = vpack.c.bf16 %v878, %v874
        %v989 = vpack.c.bf16 %v884, %v880
        %v990 = vpack.c.bf16 %v886, %v882
        %v991 = vpack.c.bf16 %v892, %v888
        %v992 = vpack.c.bf16 %v894, %v890
        %v993 = vpack.c.bf16 %v900, %v896
        %v994 = vpack.c.bf16 %v902, %v898
        %v995 = vpack.c.bf16 %v908, %v904
        %v996 = vpack.c.bf16 %v910, %v906
        %v997 = vpack.c.bf16 %v916, %v912
        %v998 = vpack.c.bf16 %v918, %v914
        %v999 = vpack.c.bf16 %v924, %v920
        %v1000 = vpack.c.bf16 %v926, %v922
        %v1001 = vpack.c.bf16 %v932, %v928
        %v1002 = vpack.c.bf16 %v934, %v930
        %v1003 = vpack.c.bf16 %v940, %v936
        %v1004 = vpack.c.bf16 %v942, %v938
        %v1005 = vpack.c.bf16 %v948, %v944
        %v1006 = vpack.c.bf16 %v950, %v946
        %v1007 = vpack.c.bf16 %v956, %v952
        %v1008 = vpack.c.bf16 %v958, %v954
        %v1009 = vpack.c.bf16 %v964, %v960
        %v1010 = vpack.c.bf16 %v966, %v962
        %v1011 = vpack.c.bf16 %v972, %v968
        %v1012 = vpack.c.bf16 %v974, %v970
        %v1013 = vpack.c.bf16 %v980, %v976
        %v1014 = vpack.c.bf16 %v982, %v978
        %1015 = vmatprep.subr.bf16.mxu0 %v998
        %1016 = vmatpush1.bf16.xpose.msra.mxu0 %v997
        %1017 = vmatprep.subr.bf16.mxu0 %v996
        %1018 = vmatpush1.bf16.xpose.msra.mxu0 %v995
        %1019 = vmatprep.subr.bf16.mxu0 %v994
        %1020 = vmatpush1.bf16.xpose.msra.mxu0 %v993
        %1021 = vmatprep.subr.bf16.mxu0 %v992
        %1022 = vmatpush1.bf16.xpose.msra.mxu0 %v991
        %1023 = vmatprep.subr.bf16.mxu0 %v990
        %1024 = vmatpush1.bf16.xpose.msra.mxu0 %v989
        %1025 = vmatprep.subr.bf16.mxu0 %v988
        %1026 = vmatpush1.bf16.xpose.msra.mxu0 %v987
        %1027 = vmatprep.subr.bf16.mxu0 %v986
        %1028 = vmatpush1.bf16.xpose.msra.mxu0 %v985
        %1029 = vmatprep.subr.bf16.mxu0 %v984
        %1030 = vmatpush1.bf16.xpose.msra.mxu0 %v983
        %1031 = vmatprep.subr.bf16.mxu0 %v1014
        %1032 = vmatpush2.bf16.xpose.msra.mxu0 %v1013
        %1033 = vmatprep.subr.bf16.mxu0 %v1012
        %1034 = vmatpush2.bf16.xpose.msra.mxu0 %v1011
        %1035 = vmatprep.subr.bf16.mxu0 %v1010
        %1036 = vmatpush2.bf16.xpose.msra.mxu0 %v1009
        %1037 = vmatprep.subr.bf16.mxu0 %v1008
        %1038 = vmatpush2.bf16.xpose.msra.mxu0 %v1007
        %1039 = vmatprep.subr.bf16.mxu0 %v1006
        %1040 = vmatpush2.bf16.xpose.msra.mxu0 %v1005
        %1041 = vmatprep.subr.bf16.mxu0 %v1004
        %1042 = vmatpush2.bf16.xpose.msra.mxu0 %v1003
        %1043 = vmatprep.subr.bf16.mxu0 %v1002
        %1044 = vmatpush2.bf16.xpose.msra.mxu0 %v1001
        %1045 = vmatprep.subr.bf16.mxu0 %v1000
        %1046 = vmatpush2.bf16.xpose.msra.mxu0 %v999
        %1047 = vmatprep.mubr.bf16.mxu0 1065369472
        %1048 = vmatmul.mubr.bf16.gmra.mxu0 1065369472
        %v1049 = vpop.f32.mrf.mxu0
        %v1050 = vadd.f32 0.0, %v1049
        %v1051 = vpop.f32.mrf.mxu0
        %v1052 = vadd.f32 0.0, %v1051
        %v1053 = vpop.f32.mrf.mxu0
        %v1054 = vpop.f32.mrf.mxu0
        %1055 = vdwg.mxu0
        %v1056 = vrcp.pop %v1050
        %v1057 = vrcp.pop %v1052
        %v1058 = vlaneseq
        %v1059 = vshrl.u32 %v1058, 7
        %v1060 = vsub.s32 0, %v1059
        %v1061 = vrot.slane %v1056, %v1060
        %v1062 = vlaneseq
        %v1063 = vshrl.u32 %v1062, 7
        %v1064 = vsub.s32 0, %v1063
        %v1065 = vrot.slane %v1057, %v1064
        %v1066 = vmul.f32 %v415, %v1061
        %v1067 = vmul.f32 %v417, %v1065
        %v1068 = vpack.c.bf16 %v1066, %v1066
        %v1069 = vpack.c.bf16 %v1067, %v1067
        %1070 = vmatprep.subr.bf16.mxu0 %v998
        %1071 = vmatpush1.bf16.msra.mxu0 %v997
        %1072 = vmatprep.subr.bf16.mxu0 %v996
        %1073 = vmatpush1.bf16.msra.mxu0 %v995
        %1074 = vmatprep.subr.bf16.mxu0 %v994
        %1075 = vmatpush1.bf16.msra.mxu0 %v993
        %1076 = vmatprep.subr.bf16.mxu0 %v992
        %1077 = vmatpush1.bf16.msra.mxu0 %v991
        %1078 = vmatprep.subr.bf16.mxu0 %v990
        %1079 = vmatpush1.bf16.msra.mxu0 %v989
        %1080 = vmatprep.subr.bf16.mxu0 %v988
        %1081 = vmatpush1.bf16.msra.mxu0 %v987
        %1082 = vmatprep.subr.bf16.mxu0 %v986
        %1083 = vmatpush1.bf16.msra.mxu0 %v985
        %1084 = vmatprep.subr.bf16.mxu0 %v984
        %1085 = vmatpush1.bf16.msra.mxu0 %v983
        %1086 = vmatprep.subr.bf16.mxu0 %v1014
        %1087 = vmatpush2.bf16.msra.mxu0 %v1013
        %1088 = vmatprep.subr.bf16.mxu0 %v1012
        %1089 = vmatpush2.bf16.msra.mxu0 %v1011
        %1090 = vmatprep.subr.bf16.mxu0 %v1010
        %1091 = vmatpush2.bf16.msra.mxu0 %v1009
        %1092 = vmatprep.subr.bf16.mxu0 %v1008
        %1093 = vmatpush2.bf16.msra.mxu0 %v1007
        %1094 = vmatprep.subr.bf16.mxu0 %v1006
        %1095 = vmatpush2.bf16.msra.mxu0 %v1005
        %1096 = vmatprep.subr.bf16.mxu0 %v1004
        %1097 = vmatpush2.bf16.msra.mxu0 %v1003
        %1098 = vmatprep.subr.bf16.mxu0 %v1002
        %1099 = vmatpush2.bf16.msra.mxu0 %v1001
        %1100 = vmatprep.subr.bf16.mxu0 %v1000
        %1101 = vmatpush2.bf16.msra.mxu0 %v999
        %1102 = vmatprep.mubr.bf16.mxu0 %v1069
        %1103 = vmatmul.mubr.bf16.gmra.mxu0 %v1068
        %v1104 = vpop.f32.mrf.mxu0
        %v1105 = vadd.f32 0.0, %v1104
        %v1106 = vpop.f32.mrf.mxu0
        %v1107 = vadd.f32 0.0, %v1106
        %v1108 = vpop.f32.mrf.mxu0
        %v1109 = vpop.f32.mrf.mxu0
        %1110 = vdwg.mxu0
        %1111 = vst [vmem:[%s217] sm:$0xff] %v1105
        %1112 = vst [vmem:[%s217 + $0x8] sm:$0xff] %v1107
        %s1113 = sand.u32 %s137, 1
        %s1114 = scalar_lea.sflag [#allocation3], %s1113
        %s1115 = sand.u32 %s137, 1
        %s1116 = smul.addr %s1115, 16
        %s1117 = scalar_lea.vmem [#allocation2], %s1116
        // Predicated region
        $region41: #{tpu_custom_call.1} parent=39 // pred_check
          %p1118 = pneg %p147
        $region42: #{tpu_custom_call.1} parent=39 // pred_check_branch
          %1120 = sbr.rel (%p1118) target = $region44
        $region43: #{tpu_custom_call.1} parent=39 // pred_region
          %s1122 = ssub.s32 256, 256
          %1123 = vsyncadd %s1114, %s1122
          %s1124 = smul.addr %s19, 2
          %s1125 = smul.addr %s1124, 128
          %s1126 = scalar_lea.hbm %s5, %s1125
          %s1128 = sshll.u32 %s1117, 4
          %s1129 = int_to_ptr.vmem [resolvable:$true] %s1128
          %1131 = dma.vmem_to_hbm [thread:$0]  %s1129, 256, %s1126, %s1114
        $region44: #{tpu_custom_call.1} parent=39 // pred_fallthru
          _
      $region40: #{tpu_custom_call.1} parent=5 // pred_fallthru
        _
      %p1132 = scmp.le.s32.totalorder 2, %s14
      // Predicated region
      $region45: #{tpu_custom_call.1} parent=5 // pred_check
        %p1133 = pneg %p1132
      $region46: #{tpu_custom_call.1} parent=5 // pred_check_branch
        %1135 = sbr.rel (%p1133) target = $region48
      $region47: #{tpu_custom_call.1} parent=5 // pred_region
        %s1136 = ssub.s32 %s14, 2
        // Predicated region
        $region49: #{tpu_custom_call.1} parent=47 // pred_check
          %p1137 = pneg %p153
        $region50: #{tpu_custom_call.1} parent=47 // pred_check_branch
          %1139 = sbr.rel (%p1137) target = $region52
        $region51: #{tpu_custom_call.1} parent=47 // pred_region
          %s1140 = sand.u32 %s138, 1
          %s1141 = scalar_lea.sflag [#allocation3], %s1140
          %s1142 = sand.u32 %s138, 1
          %s1143 = smul.addr %s1142, 16
          %s1144 = scalar_lea.vmem [#allocation2], %s1143
          %1145 = dma.done %s1141, 256
        $region52: #{tpu_custom_call.1} parent=47 // pred_fallthru
          _
      $region48: #{tpu_custom_call.1} parent=5 // pred_fallthru
        _
    $region6: #{tpu_custom_call.1} parent=1 // loop_footer
      %s18 = sadd.s32 1, %s14
    $region7: #{tpu_custom_call.1} parent=1 // loop_footer_branch
      %13 = sbr.rel target = $region3
    $region8: #{tpu_custom_call.1} parent=1 // loop_exit
      _
    %1146 = vsyncpa [#allocation3], 1
    %s1147 = scalar_lea.sflag [#allocation3], 1
    %1148 = vsyncpa %s1147, 1

</llo_original>
